<compile_context>
chip_gen: v6e
topology: v6e:2x2x1
jax: 0.10.0
libtpu: 0.0.40
codegen_flags: <defaults>
</compile_context>

<pallas_src>
import functools
import math

import jax
import jax.numpy as jnp
from jax.experimental import pallas as pl
from jax.experimental.pallas import tpu as pltpu


# ---------------------------------------------------------------------------
# Pass A: per-batch-block BCE partial sums (argmax over channels, native layout)
# ---------------------------------------------------------------------------
def _bce_partial_kernel(p_ref, y_ref, out_ref, *, num_classes, sp_table):
    """Blocks: p/y = (bn, C, rt, 128); out = (1, 8, 128) vector partial sums."""
    j = pl.program_id(1)

    @pl.when(j == 0)
    def _():
        out_ref[...] = jnp.zeros_like(out_ref)

    p = p_ref[...].astype(jnp.float32)
    y = y_ref[...].astype(jnp.float32)

    def argmax_channels(a):
        # First-occurrence argmax over the channel axis, unrolled into pure
        # VALU max/compare/select chains (channels are a leading dim -> no XLU).
        best_v = a[:, 0]
        best_i = jnp.zeros_like(best_v)
        for k in range(1, num_classes):
            v = a[:, k]
            upd = v > best_v
            best_v = jnp.where(upd, v, best_v)
            best_i = jnp.where(upd, jnp.float32(k), best_i)
        return best_i                                   # (bn, rt, 128) float idx

    x = argmax_channels(p)                              # "logits"  in {0..C-1}
    t = argmax_channels(y)                              # "targets" in {0..C-1}

    # BCE-with-logits for a non-negative integer x:
    #   max(x,0) - x*t + log1p(exp(-|x|)) = x*(1-t) + softplus(-x)
    # softplus(-x) takes only C distinct values -> select chain (no EUP).
    if num_classes <= 64:
        sp = jnp.full_like(x, jnp.float32(sp_table[0]))
        for k in range(1, num_classes):
            sp = jnp.where(x == jnp.float32(k), jnp.float32(sp_table[k]), sp)
    else:
        sp = jnp.log1p(jnp.exp(-x))
    bce = x * (1.0 - t) + sp                            # (bn, rt, 128)

    # Accumulate an (8, 128) vector partial sum; the single cross-lane reduce
    # happens once, in the wrapper, over the tiny partials array.
    bce_r = jnp.sum(bce, axis=0)                        # (rt, 128): vreg adds
    rt = bce_r.shape[0]
    if rt % 8 == 0:
        out_ref[...] += bce_r.reshape(rt // 8, 8, 128).sum(axis=0)[None]
    else:  # tiny spatial tiles only (small images); one sublane reduce per tile
        out_ref[0:1, 0:1, :] += jnp.sum(bce_r, axis=0, keepdims=True)[None]


# ---------------------------------------------------------------------------
# Pass B: tiled elementwise focal scaling  out = (1 - p)^gamma * (-mean(bce))
# ---------------------------------------------------------------------------
def _focal_scale_kernel(neg_bce_ref, p_ref, out_ref, *, gamma):
    s = neg_bce_ref[0, 0]                               # scalar -mean(bce), SMEM
    q = 1.0 - p_ref[...].astype(jnp.float32)

    g_int = int(gamma)
    if float(g_int) == float(gamma) and 0 <= g_int <= 16:
        # Integer exponent: repeated VALU multiplies instead of exp/log on EUP.
        if g_int == 0:
            qg = jnp.ones_like(q)
        else:
            qg = q
            for _ in range(g_int - 1):
                qg = qg * q
    else:
        qg = jnp.power(q, jnp.float32(gamma))
    out_ref[...] = (qg * s).astype(out_ref.dtype)


# ---------------------------------------------------------------------------
# Tiling helpers
# ---------------------------------------------------------------------------
def _physical_vmem_bytes():
    """Best-effort physical VMEM query; conservative default if unavailable."""
    try:
        info = pltpu.get_tpu_info()
        cap = getattr(info, "vmem_capacity_bytes", None)
        if cap:
            return int(cap)
    except Exception:
        pass
    return 64 << 20  # v7x-sized conservative default


def _largest_divisor_leq(x, cap):
    cap = max(1, min(x, int(cap)))
    best = 1
    for d in range(1, cap + 1):
        if x % d == 0:
            best = d
    return best


def _pass_a_tiling(n, c, R, itemsize, target_bytes=2 << 20):
    """(bn, rt) for a (bn, c, rt, 128) input tile of roughly `target_bytes`."""
    row_bytes = c * 128 * max(int(itemsize), 1)
    want_rows = max(1, target_bytes // row_bytes)
    if R <= want_rows:
        rt = R                                # full spatial extent (always legal)
    else:
        rt = 0
        d = 8
        while d <= want_rows:                 # rt < R must be a multiple of 8
            if R % d == 0:
                rt = d
            d += 8
        if rt == 0:
            rt = R                            # no legal sub-tile; caller guards size
    want_bn = max(1, want_rows // max(rt, 1))
    bn = _largest_divisor_leq(n, want_bn)
    return bn, rt


def _choose_lanes(total, max_lanes=2048):
    """Largest multiple of 128 (<= max_lanes) that divides total; 0 if none."""
    best = 0
    lanes = 128
    cap = min(max_lanes, total)
    while lanes <= cap:
        if total % lanes == 0:
            best = lanes
        lanes += 128
    return best


def _choose_row_tile(rows, cap_rows):
    cap_rows = int(max(8, min(rows, cap_rows)))
    if rows <= cap_rows:
        return rows                           # single full-extent block (legal)
    t = (cap_rows // 8) * 8
    d = t
    while d >= 8:                             # prefer an exact divisor
        if rows % d == 0:
            return d
        d -= 8
    return t                                  # cdiv grid: partial last block is
                                              # safe for a purely elementwise op


# ---------------------------------------------------------------------------
# Wrapper
# ---------------------------------------------------------------------------
def focal_loss_pallas(predicted_prob, actual_label, gamma):
    n, c, h, w = predicted_prob.shape
    hw = h * w
    m = n * hw                     # number of per-pixel BCE terms ('mean' divisor)
    total = n * c * hw

    out_dtype = jnp.promote_types(predicted_prob.dtype, jnp.float32)
    vmem_cap = _physical_vmem_bytes()
    vmem_limit = int(min(64 << 20, max(32 << 20, vmem_cap - (16 << 20))))

    # ---- Pass A: -mean(BCE) as a (1,1) scalar --------------------------------
    neg_bce = None
    if hw % 128 == 0:
        R = hw // 128
        itemsize = max(jnp.dtype(predicted_prob.dtype).itemsize,
                       jnp.dtype(actual_label.dtype).itemsize)
        bn, rt = _pass_a_tiling(n, c, R, itemsize)
        if bn * c * rt * 128 * 4 <= (8 << 20):          # never emit a giant block
            p4 = predicted_prob.reshape(n, c, R, 128)   # free views, native dtype
            y4 = actual_label.reshape(n, c, R, 128)
            sp_table = tuple(math.log1p(math.exp(-k)) for k in range(c))
            n_blocks = n // bn
            partials = pl.pallas_call(
                functools.partial(_bce_partial_kernel,
                                  num_classes=c, sp_table=sp_table),
                grid=(n_blocks, R // rt),
                in_specs=[
                    pl.BlockSpec((bn, c, rt, 128), lambda i, j: (i, 0, j, 0)),
                    pl.BlockSpec((bn, c, rt, 128), lambda i, j: (i, 0, j, 0)),
                ],
                out_specs=pl.BlockSpec((1, 8, 128), lambda i, j: (i, 0, 0)),
                out_shape=jax.ShapeDtypeStruct((n_blocks, 8, 128), jnp.float32),
                compiler_params=pltpu.CompilerParams(
                    dimension_semantics=("parallel", "arbitrary"),
                    vmem_limit_bytes=vmem_limit),
            )(p4, y4)
            # Tiny wrapper-side finalize keeps the batch grid axis megacore-parallel.
            neg_bce = jnp.sum(partials) * jnp.float32(-1.0 / m)

    if neg_bce is None:
        # TODO(synk): the Pallas Pass-A reduction needs H*W % 128 == 0 and a bounded
        # tile; for other shapes fall back to the numerically identical jnp reduction.
        x = jnp.argmax(predicted_prob, axis=1).reshape(-1).astype(jnp.float32)
        t = jnp.argmax(actual_label, axis=1).reshape(-1).astype(jnp.float32)
        bce = jnp.maximum(x, 0.0) - x * t + jnp.log1p(jnp.exp(-jnp.abs(x)))
        neg_bce = -(jnp.sum(bce) / jnp.float32(m))

    neg_bce = neg_bce.astype(jnp.float32).reshape(1, 1)

    # ---- Pass B: lane-dense tiled elementwise stream --------------------------
    kernel = functools.partial(_focal_scale_kernel, gamma=float(gamma))
    scalar_spec = pl.BlockSpec(memory_space=pltpu.MemorySpace.SMEM)
    tile_bytes = (8 << 20) if vmem_cap >= (96 << 20) else (4 << 20)

    lanes = _choose_lanes(total)
    if lanes:
        rows = total // lanes
        tile_rows = _choose_row_tile(rows, tile_bytes // (lanes * 4))
        p_flat = predicted_prob.reshape(rows, lanes)     # free view, native dtype
        out_flat = pl.pallas_call(
            kernel,
            grid=(pl.cdiv(rows, tile_rows),),
            in_specs=[scalar_spec,
                      pl.BlockSpec((tile_rows, lanes), lambda i: (i, 0))],
            out_specs=pl.BlockSpec((tile_rows, lanes), lambda i: (i, 0)),
            out_shape=jax.ShapeDtypeStruct((rows, lanes), out_dtype),
            compiler_params=pltpu.CompilerParams(
                dimension_semantics=("parallel",),
                vmem_limit_bytes=vmem_limit),
        )(neg_bce, p_flat)
        return out_flat.reshape(n, c, h, w)

    # Fallback for element counts not divisible by 128: native 4-D blocking
    # (full-extent last two dims is always a legal block shape).
    return pl.pallas_call(
        kernel,
        grid=(n,),
        in_specs=[scalar_spec,
                  pl.BlockSpec((1, c, h, w), lambda i: (i, 0, 0, 0))],
        out_specs=pl.BlockSpec((1, c, h, w), lambda i: (i, 0, 0, 0)),
        out_shape=jax.ShapeDtypeStruct((n, c, h, w), out_dtype),
        compiler_params=pltpu.CompilerParams(
            dimension_semantics=("parallel",),
            vmem_limit_bytes=vmem_limit),
    )(neg_bce, predicted_prob)


# ---------------------------------------------------------------------------
# Pure-JAX reference mirroring the PyTorch forward
# ---------------------------------------------------------------------------
def focal_loss_ref(predicted_prob, actual_label, gamma):
    x = jnp.argmax(predicted_prob, axis=1).reshape(-1).astype(jnp.float32)
    t = jnp.argmax(actual_label, axis=1).reshape(-1).astype(jnp.float32)
    bce = jnp.mean(jnp.maximum(x, 0.0) - x * t + jnp.log1p(jnp.exp(-jnp.abs(x))))
    return -((1.0 - predicted_prob) ** gamma) * bce


if __name__ == "__main__":
    gamma = 2.0  # FocalLoss.__init__ parameter

    key = jax.random.PRNGKey(0)
    k1, k2 = jax.random.split(key)
    predicted_prob = jax.random.uniform(k1, (2, 4, 16, 16), dtype=jnp.float32)
    actual_label = jax.random.uniform(k2, (2, 4, 16, 16), dtype=jnp.float32)

    out = focal_loss_pallas(predicted_prob, actual_label, gamma)
    out = jax.block_until_ready(out)

    ref = focal_loss_ref(predicted_prob, actual_label, gamma)
    assert out.shape == predicted_prob.shape and out.dtype == jnp.float32
    assert jnp.allclose(out, ref, atol=1e-5, rtol=1e-5), "mismatch vs reference"

    print("KERNEL_OK")
</pallas_src>

<mosaic_0001>
module attributes {stable_mosaic.version = 11 : i64} {
  func.func @_bce_partial_kernel(%arg0: i32, %arg1: i32, %arg2: memref<2x4x2x128xf32, #tpu.memory_space<vmem>>, %arg3: memref<2x4x2x128xf32, #tpu.memory_space<vmem>>, %arg4: memref<1x8x128xf32, #tpu.memory_space<vmem>>) attributes {dimension_semantics = [#tpu.dimension_semantics<parallel>, #tpu.dimension_semantics<arbitrary>], iteration_bounds = array<i64: 1, 1>, scalar_prefetch = 0 : i64, scratch_operands = 0 : i64, tpu.core_type = #tpu.core_type<tc>, window_params = [{transform_indices = @transform_0, window_bounds = array<i64: 2, 4, 2, 128>}, {transform_indices = @transform_1, window_bounds = array<i64: 2, 4, 2, 128>}, {transform_indices = @transform_2, window_bounds = array<i64: 1, 8, 128>}]} {
    %c0_i32 = arith.constant 0 : i32
    %0 = arith.cmpi eq, %arg1, %c0_i32 : i32
    %1 = arith.extui %0 : i1 to i32
    %c0_i32_0 = arith.constant 0 : i32
    %2 = arith.cmpi ne, %1, %c0_i32_0 : i32
    scf.if %2 {
      %cst_31 = arith.constant 0.000000e+00 : f32
      %69 = vector.broadcast %cst_31 : f32 to vector<1x8x128xf32>
      %c0_32 = arith.constant 0 : index
      %c0_33 = arith.constant 0 : index
      %c0_34 = arith.constant 0 : index
      %70 = vector.load %arg4[%c0_32, %c0_33, %c0_34] : memref<1x8x128xf32, #tpu.memory_space<vmem>>, vector<1x8x128xf32>
      tpu.vector_store %arg4[%c0_32, %c0_33, %c0_34], %69 {strides = array<i32>} : memref<1x8x128xf32, #tpu.memory_space<vmem>>, vector<1x8x128xf32>,
    } else {
    }
    %c0 = arith.constant 0 : index
    %c0_1 = arith.constant 0 : index
    %c0_2 = arith.constant 0 : index
    %c0_3 = arith.constant 0 : index
    %3 = vector.load %arg2[%c0, %c0_1, %c0_2, %c0_3] : memref<2x4x2x128xf32, #tpu.memory_space<vmem>>, vector<2x4x2x128xf32>
    %c0_4 = arith.constant 0 : index
    %c0_5 = arith.constant 0 : index
    %c0_6 = arith.constant 0 : index
    %c0_7 = arith.constant 0 : index
    %4 = vector.load %arg3[%c0_4, %c0_5, %c0_6, %c0_7] : memref<2x4x2x128xf32, #tpu.memory_space<vmem>>, vector<2x4x2x128xf32>
    %5 = vector.extract_strided_slice %3 {offsets = [0, 0, 0, 0], sizes = [2, 1, 2, 128], strides = [1, 1, 1, 1]} : vector<2x4x2x128xf32> to vector<2x1x2x128xf32>
    %6 = vector.shape_cast %5 : vector<2x1x2x128xf32> to vector<2x2x128xf32>
    %cst = arith.constant 0.000000e+00 : f32
    %7 = vector.broadcast %cst : f32 to vector<2x2x128xf32>
    %8 = vector.extract_strided_slice %3 {offsets = [0, 1, 0, 0], sizes = [2, 1, 2, 128], strides = [1, 1, 1, 1]} : vector<2x4x2x128xf32> to vector<2x1x2x128xf32>
    %9 = vector.shape_cast %8 : vector<2x1x2x128xf32> to vector<2x2x128xf32>
    %10 = arith.cmpf ogt, %9, %6 : vector<2x2x128xf32>
    %11 = arith.select %10, %9, %6 : vector<2x2x128xi1>, vector<2x2x128xf32>
    %cst_8 = arith.constant 1.000000e+00 : f32
    %12 = vector.broadcast %cst_8 : f32 to vector<2x2x128xf32>
    %13 = arith.select %10, %12, %7 : vector<2x2x128xi1>, vector<2x2x128xf32>
    %14 = vector.extract_strided_slice %3 {offsets = [0, 2, 0, 0], sizes = [2, 1, 2, 128], strides = [1, 1, 1, 1]} : vector<2x4x2x128xf32> to vector<2x1x2x128xf32>
    %15 = vector.shape_cast %14 : vector<2x1x2x128xf32> to vector<2x2x128xf32>
    %16 = arith.cmpf ogt, %15, %11 : vector<2x2x128xf32>
    %17 = arith.select %16, %15, %11 : vector<2x2x128xi1>, vector<2x2x128xf32>
    %cst_9 = arith.constant 2.000000e+00 : f32
    %18 = vector.broadcast %cst_9 : f32 to vector<2x2x128xf32>
    %19 = arith.select %16, %18, %13 : vector<2x2x128xi1>, vector<2x2x128xf32>
    %20 = vector.extract_strided_slice %3 {offsets = [0, 3, 0, 0], sizes = [2, 1, 2, 128], strides = [1, 1, 1, 1]} : vector<2x4x2x128xf32> to vector<2x1x2x128xf32>
    %21 = vector.shape_cast %20 : vector<2x1x2x128xf32> to vector<2x2x128xf32>
    %22 = arith.cmpf ogt, %21, %17 : vector<2x2x128xf32>
    %cst_10 = arith.constant 3.000000e+00 : f32
    %23 = vector.broadcast %cst_10 : f32 to vector<2x2x128xf32>
    %24 = arith.select %22, %23, %19 : vector<2x2x128xi1>, vector<2x2x128xf32>
    %25 = vector.extract_strided_slice %4 {offsets = [0, 0, 0, 0], sizes = [2, 1, 2, 128], strides = [1, 1, 1, 1]} : vector<2x4x2x128xf32> to vector<2x1x2x128xf32>
    %26 = vector.shape_cast %25 : vector<2x1x2x128xf32> to vector<2x2x128xf32>
    %cst_11 = arith.constant 0.000000e+00 : f32
    %27 = vector.broadcast %cst_11 : f32 to vector<2x2x128xf32>
    %28 = vector.extract_strided_slice %4 {offsets = [0, 1, 0, 0], sizes = [2, 1, 2, 128], strides = [1, 1, 1, 1]} : vector<2x4x2x128xf32> to vector<2x1x2x128xf32>
    %29 = vector.shape_cast %28 : vector<2x1x2x128xf32> to vector<2x2x128xf32>
    %30 = arith.cmpf ogt, %29, %26 : vector<2x2x128xf32>
    %31 = arith.select %30, %29, %26 : vector<2x2x128xi1>, vector<2x2x128xf32>
    %cst_12 = arith.constant 1.000000e+00 : f32
    %32 = vector.broadcast %cst_12 : f32 to vector<2x2x128xf32>
    %33 = arith.select %30, %32, %27 : vector<2x2x128xi1>, vector<2x2x128xf32>
    %34 = vector.extract_strided_slice %4 {offsets = [0, 2, 0, 0], sizes = [2, 1, 2, 128], strides = [1, 1, 1, 1]} : vector<2x4x2x128xf32> to vector<2x1x2x128xf32>
    %35 = vector.shape_cast %34 : vector<2x1x2x128xf32> to vector<2x2x128xf32>
    %36 = arith.cmpf ogt, %35, %31 : vector<2x2x128xf32>
    %37 = arith.select %36, %35, %31 : vector<2x2x128xi1>, vector<2x2x128xf32>
    %cst_13 = arith.constant 2.000000e+00 : f32
    %38 = vector.broadcast %cst_13 : f32 to vector<2x2x128xf32>
    %39 = arith.select %36, %38, %33 : vector<2x2x128xi1>, vector<2x2x128xf32>
    %40 = vector.extract_strided_slice %4 {offsets = [0, 3, 0, 0], sizes = [2, 1, 2, 128], strides = [1, 1, 1, 1]} : vector<2x4x2x128xf32> to vector<2x1x2x128xf32>
    %41 = vector.shape_cast %40 : vector<2x1x2x128xf32> to vector<2x2x128xf32>
    %42 = arith.cmpf ogt, %41, %37 : vector<2x2x128xf32>
    %cst_14 = arith.constant 3.000000e+00 : f32
    %43 = vector.broadcast %cst_14 : f32 to vector<2x2x128xf32>
    %44 = arith.select %42, %43, %39 : vector<2x2x128xi1>, vector<2x2x128xf32>
    %cst_15 = arith.constant 0.693147182 : f32
    %45 = vector.broadcast %cst_15 : f32 to vector<2x2x128xf32>
    %cst_16 = arith.constant 1.000000e+00 : f32
    %46 = vector.broadcast %cst_16 : f32 to vector<2x2x128xf32>
    %47 = arith.cmpf oeq, %24, %46 : vector<2x2x128xf32>
    %cst_17 = arith.constant 0.313261688 : f32
    %48 = vector.broadcast %cst_17 : f32 to vector<2x2x128xf32>
    %49 = arith.select %47, %48, %45 : vector<2x2x128xi1>, vector<2x2x128xf32>
    %cst_18 = arith.constant 2.000000e+00 : f32
    %50 = vector.broadcast %cst_18 : f32 to vector<2x2x128xf32>
    %51 = arith.cmpf oeq, %24, %50 : vector<2x2x128xf32>
    %cst_19 = arith.constant 0.126928017 : f32
    %52 = vector.broadcast %cst_19 : f32 to vector<2x2x128xf32>
    %53 = arith.select %51, %52, %49 : vector<2x2x128xi1>, vector<2x2x128xf32>
    %cst_20 = arith.constant 3.000000e+00 : f32
    %54 = vector.broadcast %cst_20 : f32 to vector<2x2x128xf32>
    %55 = arith.cmpf oeq, %24, %54 : vector<2x2x128xf32>
    %cst_21 = arith.constant 0.048587352 : f32
    %56 = vector.broadcast %cst_21 : f32 to vector<2x2x128xf32>
    %57 = arith.select %55, %56, %53 : vector<2x2x128xi1>, vector<2x2x128xf32>
    %cst_22 = arith.constant 1.000000e+00 : f32
    %58 = vector.broadcast %cst_22 : f32 to vector<2x2x128xf32>
    %59 = arith.subf %58, %44 : vector<2x2x128xf32>
    %60 = arith.mulf %24, %59 : vector<2x2x128xf32>
    %61 = arith.addf %60, %57 : vector<2x2x128xf32>
    %cst_23 = arith.constant dense<0.000000e+00> : vector<2x128xf32>
    %62 = vector.multi_reduction <add>, %61, %cst_23 [0] : vector<2x2x128xf32> to vector<2x128xf32>
    %c0_24 = arith.constant 0 : index
    %c0_25 = arith.constant 0 : index
    %c0_26 = arith.constant 0 : index
    %63 = vector.load %arg4[%c0_24, %c0_25, %c0_26] : memref<1x8x128xf32, #tpu.memory_space<vmem>>, vector<1x1x128xf32>
    %cst_27 = arith.constant dense<0.000000e+00> : vector<128xf32>
    %64 = vector.multi_reduction <add>, %62, %cst_27 [0] : vector<2x128xf32> to vector<128xf32>
    %65 = vector.shape_cast %64 : vector<128xf32> to vector<1x128xf32>
    %66 = vector.shape_cast %65 : vector<1x128xf32> to vector<1x1x128xf32>
    %67 = arith.addf %63, %66 : vector<1x1x128xf32>
    %c0_28 = arith.constant 0 : index
    %c0_29 = arith.constant 0 : index
    %c0_30 = arith.constant 0 : index
    %68 = vector.load %arg4[%c0_28, %c0_29, %c0_30] : memref<1x8x128xf32, #tpu.memory_space<vmem>>, vector<1x1x128xf32>
    tpu.vector_store %arg4[%c0_28, %c0_29, %c0_30], %67 {strides = array<i32>} : memref<1x8x128xf32, #tpu.memory_space<vmem>>, vector<1x1x128xf32>,
    return
  }
  func.func @transform_0(%arg0: i32, %arg1: i32) -> (i32, i32, i32, i32) {
    %c0_i32 = arith.constant 0 : i32
    %c0_i32_0 = arith.constant 0 : i32
    %c0_i32_1 = arith.constant 0 : i32
    return %arg0, %c0_i32, %arg1, %c0_i32_0 : i32, i32, i32, i32
  }
  func.func @transform_1(%arg0: i32, %arg1: i32) -> (i32, i32, i32, i32) {
    %c0_i32 = arith.constant 0 : i32
    %c0_i32_0 = arith.constant 0 : i32
    %c0_i32_1 = arith.constant 0 : i32
    return %arg0, %c0_i32, %arg1, %c0_i32_0 : i32, i32, i32, i32
  }
  func.func @transform_2(%arg0: i32, %arg1: i32) -> (i32, i32, i32) {
    %c0_i32 = arith.constant 0 : i32
    %c0_i32_0 = arith.constant 0 : i32
    %c0_i32_1 = arith.constant 0 : i32
    return %arg0, %c0_i32, %c0_i32_0 : i32, i32, i32
  }
}

</mosaic_0001>

<llo_original>
// kernel: tpu_custom_call.1
$region0: #{tpu_custom_call.1}
  #allocation0 [shape = 'u32[]', space=smem, size = 0x4, offset = 0x4, fixed_abs, tag = 'smem constant byte address 0x4 - core index']
  #allocation1 [shape = 'u32[144,128]{1,0:T(1,128)}', space=vmem, size = 0x12000, scoped, tag = 'internal scratch']
  %s0 = inlined_call_operand.hbm [shape: f32[2,4,2,128], index: 0, kind: input, shape index: {}]
  %s1 = inlined_call_operand.hbm [shape: f32[2,4,2,128], index: 1, kind: input, shape index: {}]
  %s2 = inlined_call_operand.hbm [shape: f32[1,8,128], index: 2, kind: output, shape index: {}]
  %s3 = sld [smem:[#allocation0]]
  $region30: #{tpu_custom_call.1} parent=0
    _
  %s5 = ssub.s32 1, %s3
  %s6 = scalar_select 0, %s5, %s3
  $region1: #{tpu_custom_call.1} parent=0
    #allocation2 [shape = 'u8[8192]{0}', space=vmem, size = 0x2000, scoped, tag = 'input window, operand 0, single buffered']
    #allocation3 [shape = 's32[1]{0}', space=sflag, size = 0x4, scoped, tag = 'scoped memory for tpu_custom_call.1']
    #allocation4 [shape = 's32[1]{0}', space=sflag, size = 0x4, scoped, tag = 'scoped memory for tpu_custom_call.1']
    #allocation5 [shape = 'u8[8192]{0}', space=vmem, size = 0x2000, scoped, tag = 'input window, operand 1, single buffered']
    #allocation6 [shape = 's32[1]{0}', space=sflag, size = 0x4, scoped, tag = 'scoped memory for tpu_custom_call.1']
    #allocation7 [shape = 'u8[4096]{0}', space=vmem, size = 0x1000, scoped, tag = 'output window, operand 0, single buffered']
    %7 = vsyncpa [#allocation3], 0
    %8 = vsyncpa [#allocation6], 0
    %9 = vsyncpa [#allocation4], 0
    // Predicated region
    $region2: #{tpu_custom_call.1} parent=1 // pred_check
      _
    $region3: #{tpu_custom_call.1} parent=1 // pred_check_branch
      %11 = sbr.rel (0) target = $region5
    $region4: #{tpu_custom_call.1} parent=1 // pred_region
      %s13 = ssub.s32 256, 256
      %14 = vsyncadd [#allocation3], %s13
      %s15 = sshll.u32 [#allocation2], 4
      %s16 = int_to_ptr.vmem [resolvable:$true] %s15
      %21 = dma.hbm_to_vmem [thread:$0]  %s0, 256, %s16, [#allocation3], 32, 32, 2
    $region5: #{tpu_custom_call.1} parent=1 // pred_fallthru
      _
    // Predicated region
    $region6: #{tpu_custom_call.1} parent=1 // pred_check
      _
    $region7: #{tpu_custom_call.1} parent=1 // pred_check_branch
      %23 = sbr.rel (0) target = $region9
    $region8: #{tpu_custom_call.1} parent=1 // pred_region
      %s25 = ssub.s32 256, 256
      %26 = vsyncadd [#allocation6], %s25
      %s27 = sshll.u32 [#allocation5], 4
      %s28 = int_to_ptr.vmem [resolvable:$true] %s27
      %33 = dma.hbm_to_vmem [thread:$0]  %s1, 256, %s28, [#allocation6], 32, 32, 2
    $region9: #{tpu_custom_call.1} parent=1 // pred_fallthru
      _
    // Predicated region
    $region10: #{tpu_custom_call.1} parent=1 // pred_check
      _
    $region11: #{tpu_custom_call.1} parent=1 // pred_check_branch
      %35 = sbr.rel (0) target = $region13
    $region12: #{tpu_custom_call.1} parent=1 // pred_region
      %36 = dma.done [#allocation3], 256
    $region13: #{tpu_custom_call.1} parent=1 // pred_fallthru
      _
    // Predicated region
    $region14: #{tpu_custom_call.1} parent=1 // pred_check
      _
    $region15: #{tpu_custom_call.1} parent=1 // pred_check_branch
      %38 = sbr.rel (0) target = $region17
    $region16: #{tpu_custom_call.1} parent=1 // pred_region
      %39 = dma.done [#allocation6], 256
    $region17: #{tpu_custom_call.1} parent=1 // pred_fallthru
      _
    %p40 = scmp.eq.s32.totalorder 0, 0
    // Predicated region
    $region18: #{tpu_custom_call.1} parent=1 // pred_check
      %p41 = pneg %p40
    $region19: #{tpu_custom_call.1} parent=1 // pred_check_branch
      %43 = sbr.rel (%p41) target = $region21
    $region20: #{tpu_custom_call.1} parent=1 // pred_region
      %44 = vst [vmem:[#allocation7] sm:$0xff] 0.0
    $region21: #{tpu_custom_call.1} parent=1 // pred_fallthru
      _
    %v45 = vld [vmem:[#allocation2] sm:$0x3]
    %v46 = vld [vmem:[#allocation2 + $0x2] sm:$0x3]
    %v47 = vld [vmem:[#allocation2 + $0x4] sm:$0x3]
    %v48 = vld [vmem:[#allocation2 + $0x6] sm:$0x3]
    %v49 = vld [vmem:[#allocation2 + $0x8] sm:$0x3]
    %v50 = vld [vmem:[#allocation2 + $0xa] sm:$0x3]
    %v51 = vld [vmem:[#allocation2 + $0xc] sm:$0x3]
    %v52 = vld [vmem:[#allocation2 + $0xe] sm:$0x3]
    %v53 = vld [vmem:[#allocation5] sm:$0x3]
    %v54 = vld [vmem:[#allocation5 + $0x2] sm:$0x3]
    %v55 = vld [vmem:[#allocation5 + $0x4] sm:$0x3]
    %v56 = vld [vmem:[#allocation5 + $0x6] sm:$0x3]
    %v57 = vld [vmem:[#allocation5 + $0x8] sm:$0x3]
    %v58 = vld [vmem:[#allocation5 + $0xa] sm:$0x3]
    %v59 = vld [vmem:[#allocation5 + $0xc] sm:$0x3]
    %v60 = vld [vmem:[#allocation5 + $0xe] sm:$0x3]
    %vm61 = vcmp.gt.f32.partialorder %v46, %v45
    %vm62 = vcmp.gt.f32.partialorder %v50, %v49
    %v63 = vsel %vm61, %v46, %v45
    %v64 = vsel %vm62, %v50, %v49
    %v65 = vsel %vm61, 1.0, 0.0
    %v66 = vsel %vm62, 1.0, 0.0
    %vm67 = vcmp.gt.f32.partialorder %v47, %v63
    %vm68 = vcmp.gt.f32.partialorder %v51, %v64
    %v69 = vsel %vm67, %v47, %v63
    %v70 = vsel %vm68, %v51, %v64
    %v71 = vsel %vm67, 2.0, %v65
    %v72 = vsel %vm68, 2.0, %v66
    %vm73 = vcmp.gt.f32.partialorder %v48, %v69
    %vm74 = vcmp.gt.f32.partialorder %v52, %v70
    %v75 = vsel %vm73, 3.0, %v71
    %v76 = vsel %vm74, 3.0, %v72
    %vm77 = vcmp.gt.f32.partialorder %v54, %v53
    %vm78 = vcmp.gt.f32.partialorder %v58, %v57
    %v79 = vsel %vm77, %v54, %v53
    %v80 = vsel %vm78, %v58, %v57
    %v81 = vsel %vm77, 1.0, 0.0
    %v82 = vsel %vm78, 1.0, 0.0
    %vm83 = vcmp.gt.f32.partialorder %v55, %v79
    %vm84 = vcmp.gt.f32.partialorder %v59, %v80
    %v85 = vsel %vm83, %v55, %v79
    %v86 = vsel %vm84, %v59, %v80
    %v87 = vsel %vm83, 2.0, %v81
    %v88 = vsel %vm84, 2.0, %v82
    %vm89 = vcmp.gt.f32.partialorder %v56, %v85
    %vm90 = vcmp.gt.f32.partialorder %v60, %v86
    %v91 = vsel %vm89, 3.0, %v87
    %v92 = vsel %vm90, 3.0, %v88
    %vm93 = vcmp.eq.f32.partialorder %v75, 1.0
    %vm94 = vcmp.eq.f32.partialorder %v76, 1.0
    %v95 = vsel %vm93, 0.3132617, 0.6931472
    %v96 = vsel %vm94, 0.3132617, 0.6931472
    %vm97 = vcmp.eq.f32.partialorder %v75, 2.0
    %vm98 = vcmp.eq.f32.partialorder %v76, 2.0
    %v99 = vsel %vm97, 0.12692802, %v95
    %v100 = vsel %vm98, 0.12692802, %v96
    %vm101 = vcmp.eq.f32.partialorder %v75, 3.0
    %vm102 = vcmp.eq.f32.partialorder %v76, 3.0
    %v103 = vsel %vm101, 0.048587352, %v99
    %v104 = vsel %vm102, 0.048587352, %v100
    %v105 = vsub.f32 1.0, %v91
    %v106 = vsub.f32 1.0, %v92
    %v107 = vmul.f32 %v75, %v105
    %v108 = vmul.f32 %v76, %v106
    %v109 = vadd.f32 %v107, %v103
    %v110 = vadd.f32 %v108, %v104
    %vm111 = vcmask 1041408
    %v112 = vsel %vm111, %v109, 0.0
    %v113 = vsel %vm111, %v110, 0.0
    %v114 = vadd.f32 %v112, %v113
    %v115 = vld [vmem:[#allocation7] sm:$0x1]
    %v116 = vsel %vm111, %v114, 0.0
    %v117 = vrot.slane %v116, 4
    %v118 = vadd.f32 %v116, %v117
    %v119 = vrot.slane %v118, 2
    %v120 = vadd.f32 %v118, %v119
    %v121 = vrot.slane %v120, 1
    %v122 = vadd.f32 %v120, %v121
    %v123 = vadd.f32 %v115, %v122
    %124 = vst [vmem:[#allocation7] sm:$0x1] %v123
    // Predicated region
    $region22: #{tpu_custom_call.1} parent=1 // pred_check
      _
    $region23: #{tpu_custom_call.1} parent=1 // pred_check_branch
      %126 = sbr.rel (0) target = $region25
    $region24: #{tpu_custom_call.1} parent=1 // pred_region
      %s128 = ssub.s32 128, 128
      %129 = vsyncadd [#allocation4], %s128
      %s131 = sshll.u32 [#allocation7], 4
      %s132 = int_to_ptr.vmem [resolvable:$true] %s131
      %134 = dma.vmem_to_hbm [thread:$0]  %s132, 128, %s2, [#allocation4]
    $region25: #{tpu_custom_call.1} parent=1 // pred_fallthru
      _
    // Predicated region
    $region26: #{tpu_custom_call.1} parent=1 // pred_check
      _
    $region27: #{tpu_custom_call.1} parent=1 // pred_check_branch
      %136 = sbr.rel (0) target = $region29
    $region28: #{tpu_custom_call.1} parent=1 // pred_region
      %137 = dma.done [#allocation4], 128
    $region29: #{tpu_custom_call.1} parent=1 // pred_fallthru
      _
    %138 = vsyncpa [#allocation3], 1
    %139 = vsyncpa [#allocation6], 1
    %140 = vsyncpa [#allocation4], 1

</llo_original>
